<compile_context>
chip_gen: v6e
topology: v6e:2x2x1
jax: 0.10.0
libtpu: 0.0.40
codegen_flags: <defaults>
</compile_context>

<pallas_src>
import math
import functools

import jax
import jax.numpy as jnp
from jax.experimental import pallas as pl
from jax.experimental.pallas import tpu as pltpu


# ----------------------------------------------------------------------------
# Generic tiled matmul (used for the output projection).
# ----------------------------------------------------------------------------

def _matmul_kernel(x_ref, w_ref, o_ref, acc_ref):
    @pl.when(pl.program_id(2) == 0)
    def _init():
        acc_ref[...] = jnp.zeros(acc_ref.shape, jnp.float32)

    acc_ref[...] += jnp.dot(x_ref[...], w_ref[...],
                            preferred_element_type=jnp.float32)

    @pl.when(pl.program_id(2) == pl.num_programs(2) - 1)
    def _done():
        o_ref[...] = acc_ref[...].astype(o_ref.dtype)


def _pick_tile(dim, target):
    """`target` if it divides `dim`, otherwise the full dim (always legal)."""
    return target if dim % target == 0 else dim


def linear(x2d, w, *, out_dtype=None, tm=256, tn=512, tk=512):
    """x2d: (M, K), w: (K, N) -> (M, N). Tiled, double-buffered, f32 accum."""
    M, K = x2d.shape
    K2, N = w.shape
    assert K == K2
    out_dtype = out_dtype if out_dtype is not None else x2d.dtype
    tm, tn, tk = _pick_tile(M, tm), _pick_tile(N, tn), _pick_tile(K, tk)

    cost = pl.CostEstimate(
        flops=int(2 * M * N * K),
        transcendentals=0,
        bytes_accessed=int(x2d.size * x2d.dtype.itemsize
                           + w.size * w.dtype.itemsize
                           + M * N * jnp.dtype(out_dtype).itemsize))

    return pl.pallas_call(
        _matmul_kernel,
        out_shape=jax.ShapeDtypeStruct((M, N), out_dtype),
        grid_spec=pltpu.PrefetchScalarGridSpec(
            num_scalar_prefetch=0,
            grid=(M // tm, N // tn, K // tk),
            in_specs=[
                pl.BlockSpec((tm, tk), lambda i, j, k: (i, k)),
                pl.BlockSpec((tk, tn), lambda i, j, k: (k, j)),
            ],
            out_specs=pl.BlockSpec((tm, tn), lambda i, j, k: (i, j)),
            scratch_shapes=[pltpu.VMEM((tm, tn), jnp.float32)]),
        compiler_params=pltpu.CompilerParams(
            dimension_semantics=("parallel", "parallel", "arbitrary"),
            vmem_limit_bytes=32 * 1024 * 1024),
        cost_estimate=cost,
    )(x2d, w)


# ----------------------------------------------------------------------------
# Fused QKV projection with the rotary embedding applied in the epilogue.
# ----------------------------------------------------------------------------

def _qkv_rope_kernel(x_ref, w_ref, cos_ref, sin_ref, o_ref, acc_ref):
    @pl.when(pl.program_id(2) == 0)
    def _init():
        acc_ref[...] = jnp.zeros(acc_ref.shape, jnp.float32)

    acc_ref[...] += jnp.dot(x_ref[...], w_ref[...],
                            preferred_element_type=jnp.float32)

    @pl.when(pl.program_id(2) == pl.num_programs(2) - 1)
    def _finalize():
        acc = acc_ref[...]                       # (tm, tn) f32
        tn = acc.shape[1]
        # Pairwise swap of adjacent (even, odd) lanes, expressed as a small
        # MXU permutation so it is layout-robust on v5e/v6e/v7x.  Runs only on
        # the last K step (extra cost ~ tn/K of the matmul flops).
        # TODO(synk): could use pltpu.roll(+/-1) + parity select on the XLU to
        # avoid the extra MXU pass.
        row = jax.lax.broadcasted_iota(jnp.int32, (tn, tn), 0)
        col = jax.lax.broadcasted_iota(jnp.int32, (tn, tn), 1)
        partner = row + 1 - 2 * (row % 2)        # 2i <-> 2i+1
        perm = (col == partner).astype(jnp.float32)
        swapped = jnp.dot(acc, perm, preferred_element_type=jnp.float32)
        # Interleaved (real, imag) RoPE:
        #   out[2i]   = x[2i]*cos_i - x[2i+1]*sin_i
        #   out[2i+1] = x[2i+1]*cos_i + x[2i]*sin_i
        # (cos_ref/sin_ref are pre-expanded; V columns carry cos=1, sin=0.)
        out = acc * cos_ref[...] + swapped * sin_ref[...]
        o_ref[...] = out.astype(o_ref.dtype)


def qkv_rope_projection(x2d, w_qkv, cos_full, sin_full, *, seq_len,
                        tm=256, tn=256, tk=512):
    """x2d: (B*S, dim), w_qkv: (dim, (Hq+2*Hkv)*D) -> (B*S, (Hq+2*Hkv)*D).

    RoPE (with the 1/sqrt(head_dim) scale already folded into the Q columns of
    w_qkv) is applied in the epilogue of the tiled matmul."""
    M, K = x2d.shape
    _, N = w_qkv.shape
    S = seq_len
    assert M % S == 0, "rows must be laid out (B*S, dim)"
    tm = tm if S % tm == 0 else S      # row tiles must not straddle sequences
    tn, tk = _pick_tile(N, tn), _pick_tile(K, tk)
    s_blocks = S // tm                 # cos/sin row-blocks reused across batch

    cost = pl.CostEstimate(
        flops=int(2 * M * N * K + 2 * M * N * tn + 4 * M * N),
        transcendentals=0,
        bytes_accessed=int(x2d.size * x2d.dtype.itemsize
                           + w_qkv.size * w_qkv.dtype.itemsize
                           + 2 * cos_full.size * 4
                           + M * N * x2d.dtype.itemsize))

    return pl.pallas_call(
        _qkv_rope_kernel,
        out_shape=jax.ShapeDtypeStruct((M, N), x2d.dtype),
        grid_spec=pltpu.PrefetchScalarGridSpec(
            num_scalar_prefetch=0,
            grid=(M // tm, N // tn, K // tk),
            in_specs=[
                pl.BlockSpec((tm, tk), lambda i, j, k: (i, k)),
                pl.BlockSpec((tk, tn), lambda i, j, k: (k, j)),
                pl.BlockSpec((tm, tn), lambda i, j, k: (i % s_blocks, j)),
                pl.BlockSpec((tm, tn), lambda i, j, k: (i % s_blocks, j)),
            ],
            out_specs=pl.BlockSpec((tm, tn), lambda i, j, k: (i, j)),
            scratch_shapes=[pltpu.VMEM((tm, tn), jnp.float32)]),
        compiler_params=pltpu.CompilerParams(
            dimension_semantics=("parallel", "parallel", "arbitrary"),
            vmem_limit_bytes=32 * 1024 * 1024),
        cost_estimate=cost,
    )(x2d, w_qkv, cos_full, sin_full)


def _build_rope_tables(cos, sin, n_heads_q, n_kv_heads, head_dim):
    """Expand (S, head_dim//2) cos/sin into (S, N_qkv) tables matching the
    torch.view_as_complex interleaved pairing; V columns get (cos=1, sin=0)."""
    S = cos.shape[0]
    cos = cos.astype(jnp.float32)
    sin = sin.astype(jnp.float32)
    cos_pair = jnp.repeat(cos, 2, axis=-1)                            # c0,c0,c1,c1,...
    sin_pair = jnp.stack([-sin, sin], axis=-1).reshape(S, head_dim)   # -s0,s0,-s1,s1,...
    n_rope_heads = n_heads_q + n_kv_heads
    cos_qk = jnp.tile(cos_pair, (1, n_rope_heads))
    sin_qk = jnp.tile(sin_pair, (1, n_rope_heads))
    v_cols = n_kv_heads * head_dim
    cos_full = jnp.concatenate([cos_qk, jnp.ones((S, v_cols), jnp.float32)], axis=1)
    sin_full = jnp.concatenate([sin_qk, jnp.zeros((S, v_cols), jnp.float32)], axis=1)
    return cos_full, sin_full


# ----------------------------------------------------------------------------
# Flash-style attention, reading K/V straight out of the cache layout.
# ----------------------------------------------------------------------------

def _flash_attn_kernel(q_ref, k_ref, v_ref, o_ref, m_ref, l_ref, acc_ref, *,
                       kv_len, tkv):
    kv = pl.program_id(2)

    @pl.when(kv == 0)
    def _init():
        m_ref[...] = jnp.full(m_ref.shape, -jnp.inf, jnp.float32)
        l_ref[...] = jnp.zeros(l_ref.shape, jnp.float32)
        acc_ref[...] = jnp.zeros(acc_ref.shape, jnp.float32)

    q = q_ref[0, 0]          # (G, D)   G = n_rep * S (all heads of the group)
    k = k_ref[0, 0]          # (tkv, D)
    v = v_ref[0, 0]          # (tkv, D)

    s = jax.lax.dot_general(q, k, (((1,), (1,)), ((), ())),
                            preferred_element_type=jnp.float32)     # (G, tkv)
    # 1/sqrt(head_dim) already folded into wq.
    if kv_len % tkv != 0:    # mask cache slots beyond the live KV length
        t = kv * tkv + jax.lax.broadcasted_iota(jnp.int32, s.shape, 1)
        s = jnp.where(t < kv_len, s, -jnp.inf)
    # NOTE: the reference PyTorch module applies no causal mask, so none here.

    m_prev = m_ref[...]
    m_new = jnp.maximum(m_prev, jnp.max(s, axis=-1, keepdims=True))
    alpha = jnp.exp(m_prev - m_new)
    p = jnp.exp(s - m_new)
    l_ref[...] = alpha * l_ref[...] + jnp.sum(p, axis=-1, keepdims=True)
    acc_ref[...] = alpha * acc_ref[...] + jnp.dot(
        p.astype(v.dtype), v, preferred_element_type=jnp.float32)
    m_ref[...] = m_new

    @pl.when(kv == pl.num_programs(2) - 1)
    def _done():
        inv_l = pl.reciprocal(l_ref[...], approx=True)
        o_ref[0, 0] = (acc_ref[...] * inv_l).astype(o_ref.dtype)


def flash_attention(q, k_cache, v_cache, *, kv_len, tkv=512):
    """q: (B, Hkv, n_rep*S, D); caches: (maxB, Hkv, maxT, D) -> like q.

    GQA is handled by grouping the n_rep query heads of each KV group into one
    block; K/V are read directly from the cache layout (no HBM transpose)."""
    B, Hkv, G, D = q.shape
    maxB, _, maxT, _ = k_cache.shape
    tkv = min(tkv, maxT)
    if maxT % tkv:
        tkv = maxT
    num_kv = pl.cdiv(kv_len, tkv)
    t_proc = num_kv * tkv

    kernel = functools.partial(_flash_attn_kernel, kv_len=kv_len, tkv=tkv)
    cost = pl.CostEstimate(
        flops=int(4 * B * Hkv * G * D * t_proc),
        transcendentals=int(B * Hkv * G * t_proc),
        bytes_accessed=int(2 * q.size * q.dtype.itemsize
                           + 2 * B * Hkv * t_proc * D * k_cache.dtype.itemsize))

    return pl.pallas_call(
        kernel,
        out_shape=jax.ShapeDtypeStruct((B, Hkv, G, D), q.dtype),
        grid_spec=pltpu.PrefetchScalarGridSpec(
            num_scalar_prefetch=0,
            grid=(B, Hkv, num_kv),
            in_specs=[
                pl.BlockSpec((1, 1, G, D), lambda b, g, kv: (b, g, 0, 0)),
                pl.BlockSpec((1, 1, tkv, D), lambda b, g, kv: (b, g, kv, 0)),
                pl.BlockSpec((1, 1, tkv, D), lambda b, g, kv: (b, g, kv, 0)),
            ],
            out_specs=pl.BlockSpec((1, 1, G, D), lambda b, g, kv: (b, g, 0, 0)),
            scratch_shapes=[
                pltpu.VMEM((G, 1), jnp.float32),   # running max
                pltpu.VMEM((G, 1), jnp.float32),   # running denom
                pltpu.VMEM((G, D), jnp.float32),   # output accumulator
            ]),
        compiler_params=pltpu.CompilerParams(
            dimension_semantics=("parallel", "parallel", "arbitrary"),
            vmem_limit_bytes=32 * 1024 * 1024),
        cost_estimate=cost,
    )(q, k_cache, v_cache)


# ----------------------------------------------------------------------------
# Module port
# ----------------------------------------------------------------------------

class SelfAttention:
    """JAX/Pallas port of the PyTorch LLaMA SelfAttention module."""

    def __init__(self, key, dim, n_heads, n_kv_heads, max_batch_size,
                 max_seq_len, param_dtype=jnp.float32,
                 compute_dtype=jnp.bfloat16):
        self.n_kv_heads = n_heads if n_kv_heads is None else n_kv_heads
        self.n_heads_q = n_heads
        self.n_rep = self.n_heads_q // self.n_kv_heads
        self.head_dim = dim // n_heads
        self.dim = dim
        self.compute_dtype = compute_dtype

        k1, k2, k3, k4 = jax.random.split(key, 4)

        def init_linear(k, fan_in, fan_out):
            bound = 1.0 / math.sqrt(fan_in)   # nn.Linear default init
            return jax.random.uniform(k, (fan_in, fan_out), param_dtype,
                                      minval=-bound, maxval=bound)

        # Raw weights, stored transposed as (in, out).
        self.wq = init_linear(k1, dim, self.n_heads_q * self.head_dim)
        self.wk = init_linear(k2, dim, self.n_kv_heads * self.head_dim)
        self.wv = init_linear(k3, dim, self.n_kv_heads * self.head_dim)
        self.wo = init_linear(k4, self.n_heads_q * self.head_dim, dim)

        # Fused QKV weight for the kernels; the 1/sqrt(head_dim) score scale
        # is folded into wq (RoPE is linear, so scaling commutes with it).
        scale = 1.0 / math.sqrt(self.head_dim)
        self.w_qkv = jnp.concatenate(
            [self.wq * scale, self.wk, self.wv], axis=1).astype(compute_dtype)
        self.wo_c = self.wo.astype(compute_dtype)

        # KV cache in (batch, kv_head, seq, head_dim) layout so the attention
        # kernel reads it directly (no per-step HBM transpose of the cache).
        self.cache_k = jnp.zeros(
            (max_batch_size, self.n_kv_heads, max_seq_len, self.head_dim),
            compute_dtype)
        self.cache_v = jnp.zeros_like(self.cache_k)

    def __call__(self, x, start_pos, freqs_cos, freqs_sin):
        B, S, dim = x.shape
        Hq, Hkv, D = self.n_heads_q, self.n_kv_heads, self.head_dim
        n_rep = self.n_rep
        M = B * S

        cos_full, sin_full = _build_rope_tables(freqs_cos, freqs_sin, Hq, Hkv, D)

        x2d = x.reshape(M, dim).astype(self.compute_dtype)
        qkv = qkv_rope_projection(x2d, self.w_qkv, cos_full, sin_full,
                                  seq_len=S)                    # (M, Nqkv)

        q = qkv[:, :Hq * D].reshape(B, S, Hq, D)
        xk = qkv[:, Hq * D:(Hq + Hkv) * D].reshape(B, S, Hkv, D)
        xv = qkv[:, (Hq + Hkv) * D:].reshape(B, S, Hkv, D)

        # KV-cache writeback (only the new chunk is transposed, never the cache).
        # TODO(synk): under jit with buffer donation this is in-place; an
        # aliased in-kernel writeback (input_output_aliases) would also avoid
        # the copy in eager mode.
        k_new = jnp.transpose(xk, (0, 2, 1, 3))
        v_new = jnp.transpose(xv, (0, 2, 1, 3))
        self.cache_k = jax.lax.dynamic_update_slice(
            self.cache_k, k_new, (0, 0, start_pos, 0))
        self.cache_v = jax.lax.dynamic_update_slice(
            self.cache_v, v_new, (0, 0, start_pos, 0))

        kv_len = start_pos + S
        # Group the n_rep query heads of each KV group: score matmul M = n_rep*S
        # and each KV tile is fetched once per group.
        q_att = jnp.transpose(q, (0, 2, 1, 3)).reshape(B, Hkv, n_rep * S, D)
        attn = flash_attention(q_att, self.cache_k, self.cache_v, kv_len=kv_len)
        attn = attn.reshape(B, Hkv, n_rep, S, D).transpose(0, 3, 1, 2, 4)
        attn = attn.reshape(M, Hq * D)

        out = linear(attn.astype(self.compute_dtype), self.wo_c,
                     out_dtype=x.dtype)
        return out.reshape(B, S, dim)


# ----------------------------------------------------------------------------
# Helpers / pure-JAX reference (mirrors the kernel's dtype policy)
# ----------------------------------------------------------------------------

def precompute_freqs(head_dim, seq_len, start_pos=0, theta=10000.0):
    freqs = 1.0 / (theta ** (jnp.arange(0, head_dim, 2, dtype=jnp.float32)
                             / head_dim))
    t = jnp.arange(start_pos, start_pos + seq_len, dtype=jnp.float32)
    angles = jnp.outer(t, freqs)                 # (S, head_dim//2)
    return jnp.cos(angles), jnp.sin(angles)


def reference_forward(x, wq, wk, wv, wo, n_heads, n_kv_heads, start_pos,
                      cos, sin, max_batch, max_seq, compute_dtype=jnp.bfloat16):
    B, S, dim = x.shape
    hd = dim // n_heads
    n_rep = n_heads // n_kv_heads
    scale = 1.0 / math.sqrt(hd)

    xb = x.reshape(B * S, dim).astype(compute_dtype)
    wqs = (wq * scale).astype(compute_dtype)
    wkb = wk.astype(compute_dtype)
    wvb = wv.astype(compute_dtype)
    wob = wo.astype(compute_dtype)

    def mm(a, b):
        return jnp.dot(a, b, preferred_element_type=jnp.float32)

    q = mm(xb, wqs).reshape(B, S, n_heads, hd)
    k = mm(xb, wkb).reshape(B, S, n_kv_heads, hd)
    v = mm(xb, wvb).reshape(B, S, n_kv_heads, hd)

    def rope(t):
        Bt, St, Ht, Dt = t.shape
        tp = t.reshape(Bt, St, Ht, Dt // 2, 2)
        tr, ti = tp[..., 0], tp[..., 1]
        c = cos.reshape(1, St, 1, Dt // 2).astype(jnp.float32)
        s = sin.reshape(1, St, 1, Dt // 2).astype(jnp.float32)
        return jnp.stack([tr * c - ti * s, tr * s + ti * c],
                         axis=-1).reshape(Bt, St, Ht, Dt)

    q = rope(q).astype(compute_dtype)
    k = rope(k).astype(compute_dtype)
    v = v.astype(compute_dtype)

    cache_k = jnp.zeros((max_batch, max_seq, n_kv_heads, hd), compute_dtype)
    cache_v = jnp.zeros_like(cache_k)
    cache_k = jax.lax.dynamic_update_slice(cache_k, k, (0, start_pos, 0, 0))
    cache_v = jax.lax.dynamic_update_slice(cache_v, v, (0, start_pos, 0, 0))
    T = start_pos + S
    keys = jnp.repeat(cache_k[:B, :T], n_rep, axis=2)
    values = jnp.repeat(cache_v[:B, :T], n_rep, axis=2)

    qh = jnp.transpose(q, (0, 2, 1, 3))
    kh = jnp.transpose(keys, (0, 2, 1, 3))
    vh = jnp.transpose(values, (0, 2, 1, 3))
    scores = jnp.einsum('bhsd,bhtd->bhst', qh, kh,
                        preferred_element_type=jnp.float32)
    p = jax.nn.softmax(scores, axis=-1).astype(compute_dtype)
    out = jnp.einsum('bhst,bhtd->bhsd', p, vh,
                     preferred_element_type=jnp.float32).astype(compute_dtype)
    out = jnp.transpose(out, (0, 2, 1, 3)).reshape(B, S, n_heads * hd)
    return mm(out, wob).astype(x.dtype).reshape(B, S, dim)


# ----------------------------------------------------------------------------
# main
# ----------------------------------------------------------------------------

if __name__ == "__main__":
    # Small LLaMA-like config: dim=32, 4 query heads, 2 kv heads (GQA, n_rep=2)
    B, S, DIM = 2, 16, 32
    N_HEADS, N_KV_HEADS = 4, 2
    MAX_B, MAX_S = 2, 32
    START_POS = 0
    HEAD_DIM = DIM // N_HEADS

    key = jax.random.PRNGKey(0)
    k_params, k_x = jax.random.split(key)

    attn = SelfAttention(k_params, DIM, N_HEADS, N_KV_HEADS, MAX_B, MAX_S)
    x = jax.random.normal(k_x, (B, S, DIM), dtype=jnp.float32)
    freqs_cos, freqs_sin = precompute_freqs(HEAD_DIM, S, START_POS)

    out = attn(x, START_POS, freqs_cos, freqs_sin)
    out = jax.block_until_ready(out)
    assert out.shape == (B, S, DIM)

    ref = reference_forward(x, attn.wq, attn.wk, attn.wv, attn.wo,
                            N_HEADS, N_KV_HEADS, START_POS,
                            freqs_cos, freqs_sin, MAX_B, MAX_S)
    max_err = float(jnp.max(jnp.abs(out - ref)))
    assert jnp.allclose(out, ref, rtol=5e-2, atol=5e-2), \
        f"mismatch vs reference (max abs err = {max_err})"

    # Second step: exercise start_pos != 0 (cache append + longer KV length).
    freqs_cos2, freqs_sin2 = precompute_freqs(HEAD_DIM, S, start_pos=S)
    out2 = attn(x, S, freqs_cos2, freqs_sin2)
    out2 = jax.block_until_ready(out2)
    assert out2.shape == (B, S, DIM)
    assert bool(jnp.all(jnp.isfinite(out2)))

    print("KERNEL_OK")
</pallas_src>

<mosaic_0001>
module attributes {stable_mosaic.version = 11 : i64} {
  func.func @_qkv_rope_kernel(%arg0: i32, %arg1: i32, %arg2: i32, %arg3: memref<16x32xbf16, #tpu.memory_space<vmem>>, %arg4: memref<32x64xbf16, #tpu.memory_space<vmem>>, %arg5: memref<16x64xf32, #tpu.memory_space<vmem>>, %arg6: memref<16x64xf32, #tpu.memory_space<vmem>>, %arg7: memref<16x64xbf16, #tpu.memory_space<vmem>>, %arg8: memref<16x64xf32, #tpu.memory_space<vmem>>) attributes {dimension_semantics = [#tpu.dimension_semantics<parallel>, #tpu.dimension_semantics<parallel>, #tpu.dimension_semantics<arbitrary>], iteration_bounds = array<i64: 2, 1, 1>, scalar_prefetch = 0 : i64, scratch_operands = 1 : i64, tpu.core_type = #tpu.core_type<tc>, window_params = [{transform_indices = @transform_0, window_bounds = array<i64: 16, 32>}, {transform_indices = @transform_1, window_bounds = array<i64: 32, 64>}, {transform_indices = @transform_2, window_bounds = array<i64: 16, 64>}, {transform_indices = @transform_3, window_bounds = array<i64: 16, 64>}, {transform_indices = @transform_4, window_bounds = array<i64: 16, 64>}]} {
    %c0_i32 = arith.constant 0 : i32
    %0 = arith.cmpi eq, %arg2, %c0_i32 : i32
    %1 = arith.extui %0 : i1 to i32
    %c0_i32_0 = arith.constant 0 : i32
    %2 = arith.cmpi ne, %1, %c0_i32_0 : i32
    scf.if %2 {
      %cst_10 = arith.constant 0.000000e+00 : f32
      %12 = vector.broadcast %cst_10 : f32 to vector<16x64xf32>
      %c0_11 = arith.constant 0 : index
      %c0_12 = arith.constant 0 : index
      %13 = vector.load %arg8[%c0_11, %c0_12] : memref<16x64xf32, #tpu.memory_space<vmem>>, vector<16x64xf32>
      tpu.vector_store %arg8[%c0_11, %c0_12], %12 {strides = array<i32>} : memref<16x64xf32, #tpu.memory_space<vmem>>, vector<16x64xf32>,
    } else {
    }
    %c0 = arith.constant 0 : index
    %c0_1 = arith.constant 0 : index
    %3 = vector.load %arg8[%c0, %c0_1] : memref<16x64xf32, #tpu.memory_space<vmem>>, vector<16x64xf32>
    %c0_2 = arith.constant 0 : index
    %c0_3 = arith.constant 0 : index
    %4 = vector.load %arg3[%c0_2, %c0_3] : memref<16x32xbf16, #tpu.memory_space<vmem>>, vector<16x32xbf16>
    %c0_4 = arith.constant 0 : index
    %c0_5 = arith.constant 0 : index
    %5 = vector.load %arg4[%c0_4, %c0_5] : memref<32x64xbf16, #tpu.memory_space<vmem>>, vector<32x64xbf16>
    %cst = arith.constant dense<0.000000e+00> : vector<16x64xf32>
    %6 = tpu.matmul %4, %5, %cst {dimension_numbers = #tpu.dot_dimension_numbers<[1], [0], [0], [1], [0, 0, 1, 1], [], []>} : vector<16x32xbf16>, vector<32x64xbf16>, vector<16x64xf32> -> vector<16x64xf32>
    %7 = arith.addf %3, %6 : vector<16x64xf32>
    %c0_6 = arith.constant 0 : index
    %c0_7 = arith.constant 0 : index
    %8 = vector.load %arg8[%c0_6, %c0_7] : memref<16x64xf32, #tpu.memory_space<vmem>>, vector<16x64xf32>
    tpu.vector_store %arg8[%c0_6, %c0_7], %7 {strides = array<i32>} : memref<16x64xf32, #tpu.memory_space<vmem>>, vector<16x64xf32>,
    %c0_i32_8 = arith.constant 0 : i32
    %9 = arith.cmpi eq, %arg2, %c0_i32_8 : i32
    %10 = arith.extui %9 : i1 to i32
    %c0_i32_9 = arith.constant 0 : i32
    %11 = arith.cmpi ne, %10, %c0_i32_9 : i32
    scf.if %11 {
      %c0_10 = arith.constant 0 : index
      %c0_11 = arith.constant 0 : index
      %12 = vector.load %arg8[%c0_10, %c0_11] : memref<16x64xf32, #tpu.memory_space<vmem>>, vector<16x64xf32>
      %13 = tpu.iota {dimensions = array<i32: 0>} : vector<64x64xi32>
      %14 = tpu.iota {dimensions = array<i32: 1>} : vector<64x64xi32>
      %c1_i32 = arith.constant 1 : i32
      %15 = vector.broadcast %c1_i32 : i32 to vector<64x64xi32>
      %16 = arith.addi %13, %15 : vector<64x64xi32>
      %c2_i32 = arith.constant 2 : i32
      %c0_i32_12 = arith.constant 0 : i32
      %17 = arith.cmpi eq, %c2_i32, %c0_i32_12 : i32
      %c1_i32_13 = arith.constant 1 : i32
      %18 = arith.select %17, %c1_i32_13, %c2_i32 : i32
      %19 = vector.broadcast %18 : i32 to vector<64x64xi32>
      %20 = arith.remsi %13, %19 : vector<64x64xi32>
      %c0_i32_14 = arith.constant 0 : i32
      %21 = vector.broadcast %c0_i32_14 : i32 to vector<64x64xi32>
      %22 = arith.cmpi ne, %20, %21 : vector<64x64xi32>
      %c0_i32_15 = arith.constant 0 : i32
      %23 = vector.broadcast %c0_i32_15 : i32 to vector<64x64xi32>
      %24 = arith.cmpi slt, %20, %23 : vector<64x64xi32>
      %c0_i32_16 = arith.constant 0 : i32
      %25 = arith.cmpi slt, %18, %c0_i32_16 : i32
      %26 = vector.broadcast %25 : i1 to vector<64x64xi1>
      %27 = vector.broadcast %26 : vector<64x64xi1> to vector<64x64xi1>
      %28 = arith.xori %24, %27 : vector<64x64xi1>
      %29 = arith.andi %28, %22 : vector<64x64xi1>
      %30 = vector.broadcast %18 : i32 to vector<64x64xi32>
      %31 = arith.addi %20, %30 : vector<64x64xi32>
      %32 = arith.select %29, %31, %20 : vector<64x64xi1>, vector<64x64xi32>
      %c2_i32_17 = arith.constant 2 : i32
      %33 = vector.broadcast %c2_i32_17 : i32 to vector<64x64xi32>
      %34 = arith.muli %33, %32 : vector<64x64xi32>
      %35 = arith.subi %16, %34 : vector<64x64xi32>
      %36 = arith.cmpi eq, %14, %35 : vector<64x64xi32>
      %37 = arith.extui %36 : vector<64x64xi1> to vector<64x64xi32>
      %38 = arith.sitofp %37 : vector<64x64xi32> to vector<64x64xf32>
      %cst_18 = arith.constant dense<0.000000e+00> : vector<16x64xf32>
      %39 = tpu.matmul %12, %38, %cst_18 {dimension_numbers = #tpu.dot_dimension_numbers<[1], [0], [0], [1], [0, 0, 1, 1], [], []>} : vector<16x64xf32>, vector<64x64xf32>, vector<16x64xf32> -> vector<16x64xf32>
      %c0_19 = arith.constant 0 : index
      %c0_20 = arith.constant 0 : index
      %40 = vector.load %arg5[%c0_19, %c0_20] : memref<16x64xf32, #tpu.memory_space<vmem>>, vector<16x64xf32>
      %41 = arith.mulf %12, %40 : vector<16x64xf32>
      %c0_21 = arith.constant 0 : index
      %c0_22 = arith.constant 0 : index
      %42 = vector.load %arg6[%c0_21, %c0_22] : memref<16x64xf32, #tpu.memory_space<vmem>>, vector<16x64xf32>
      %43 = arith.mulf %39, %42 : vector<16x64xf32>
      %44 = arith.addf %41, %43 : vector<16x64xf32>
      %45 = arith.truncf %44 : vector<16x64xf32> to vector<16x64xbf16>
      %c0_23 = arith.constant 0 : index
      %c0_24 = arith.constant 0 : index
      %46 = vector.load %arg7[%c0_23, %c0_24] : memref<16x64xbf16, #tpu.memory_space<vmem>>, vector<16x64xbf16>
      tpu.vector_store %arg7[%c0_23, %c0_24], %45 {strides = array<i32>} : memref<16x64xbf16, #tpu.memory_space<vmem>>, vector<16x64xbf16>,
    } else {
    }
    return
  }
  func.func @transform_0(%arg0: i32, %arg1: i32, %arg2: i32) -> (i32, i32) {
    %c0_i32 = arith.constant 0 : i32
    return %arg0, %arg2 : i32, i32
  }
  func.func @transform_1(%arg0: i32, %arg1: i32, %arg2: i32) -> (i32, i32) {
    %c0_i32 = arith.constant 0 : i32
    return %arg2, %arg1 : i32, i32
  }
  func.func @transform_2(%arg0: i32, %arg1: i32, %arg2: i32) -> (i32, i32) {
    %c1_i32 = arith.constant 1 : i32
    %c0_i32 = arith.constant 0 : i32
    %0 = arith.cmpi eq, %c1_i32, %c0_i32 : i32
    %c1_i32_0 = arith.constant 1 : i32
    %1 = arith.select %0, %c1_i32_0, %c1_i32 : i32
    %2 = arith.remsi %arg0, %1 : i32
    %c0_i32_1 = arith.constant 0 : i32
    %3 = arith.cmpi ne, %2, %c0_i32_1 : i32
    %c0_i32_2 = arith.constant 0 : i32
    %4 = arith.cmpi slt, %2, %c0_i32_2 : i32
    %c0_i32_3 = arith.constant 0 : i32
    %5 = arith.cmpi slt, %1, %c0_i32_3 : i32
    %6 = arith.xori %4, %5 : i1
    %7 = arith.andi %6, %3 : i1
    %8 = arith.addi %2, %1 : i32
    %9 = arith.select %7, %8, %2 : i32
    %c0_i32_4 = arith.constant 0 : i32
    return %9, %arg1 : i32, i32
  }
  func.func @transform_3(%arg0: i32, %arg1: i32, %arg2: i32) -> (i32, i32) {
    %c1_i32 = arith.constant 1 : i32
    %c0_i32 = arith.constant 0 : i32
    %0 = arith.cmpi eq, %c1_i32, %c0_i32 : i32
    %c1_i32_0 = arith.constant 1 : i32
    %1 = arith.select %0, %c1_i32_0, %c1_i32 : i32
    %2 = arith.remsi %arg0, %1 : i32
    %c0_i32_1 = arith.constant 0 : i32
    %3 = arith.cmpi ne, %2, %c0_i32_1 : i32
    %c0_i32_2 = arith.constant 0 : i32
    %4 = arith.cmpi slt, %2, %c0_i32_2 : i32
    %c0_i32_3 = arith.constant 0 : i32
    %5 = arith.cmpi slt, %1, %c0_i32_3 : i32
    %6 = arith.xori %4, %5 : i1
    %7 = arith.andi %6, %3 : i1
    %8 = arith.addi %2, %1 : i32
    %9 = arith.select %7, %8, %2 : i32
    %c0_i32_4 = arith.constant 0 : i32
    return %9, %arg1 : i32, i32
  }
  func.func @transform_4(%arg0: i32, %arg1: i32, %arg2: i32) -> (i32, i32) {
    %c0_i32 = arith.constant 0 : i32
    return %arg0, %arg1 : i32, i32
  }
}

</mosaic_0001>

<llo_original>
// kernel: tpu_custom_call.1
$region0: #{tpu_custom_call.1}
  #allocation0 [shape = 'u32[]', space=smem, size = 0x4, offset = 0x4, fixed_abs, tag = 'smem constant byte address 0x4 - core index']
  #allocation1 [shape = 'u32[144,128]{1,0:T(1,128)}', space=vmem, size = 0x12000, scoped, tag = 'internal scratch']
  #allocation2 [shape = 'f32[16,64]{1,0:T(8,128)}', space=vmem, size = 0x2000, scoped, tag = 'scratch operand']
  %s0 = inlined_call_operand.hbm [shape: bf16[32,32], index: 0, kind: input, shape index: {}]
  %s1 = inlined_call_operand.hbm [shape: bf16[32,64], index: 1, kind: input, shape index: {}]
  %s2 = inlined_call_operand.hbm [shape: f32[16,64], index: 2, kind: input, shape index: {}]
  %s3 = inlined_call_operand.hbm [shape: f32[16,64], index: 3, kind: input, shape index: {}]
  %s4 = inlined_call_operand.hbm [shape: bf16[32,64], index: 4, kind: output, shape index: {}]
  %s5 = sld [smem:[#allocation0]]
  $region73: #{tpu_custom_call.1} parent=0
    _
  %s7 = ssub.s32 1, %s5
  %s8 = scalar_select 0, %s7, %s5
  $region1: #{tpu_custom_call.1} parent=0
    #allocation3 [shape = 'u8[8192]{0}', space=vmem, size = 0x2000, scoped, tag = 'input window, operand 0']
    #allocation4 [shape = 's32[2]{0}', space=sflag, size = 0x8, scoped, tag = 'scoped memory for tpu_custom_call.1']
    #allocation5 [shape = 's32[2]{0}', space=sflag, size = 0x8, scoped, tag = 'scoped memory for tpu_custom_call.1']
    #allocation6 [shape = 'u8[8192]{0}', space=vmem, size = 0x2000, scoped, tag = 'input window, operand 1, single buffered']
    #allocation7 [shape = 's32[1]{0}', space=sflag, size = 0x4, scoped, tag = 'scoped memory for tpu_custom_call.1']
    #allocation8 [shape = 'u8[8192]{0}', space=vmem, size = 0x2000, scoped, tag = 'input window, operand 2, single buffered']
    #allocation9 [shape = 'u8[8192]{0}', space=vmem, size = 0x2000, scoped, tag = 'input window, operand 3, single buffered']
    #allocation10 [shape = 's32[1]{0}', space=sflag, size = 0x4, scoped, tag = 'scoped memory for tpu_custom_call.1']
    #allocation11 [shape = 'u8[8192]{0}', space=vmem, size = 0x2000, scoped, tag = 'output window, operand 0']
    %9 = vsyncpa [#allocation4], 0
    %s10 = scalar_lea.sflag [#allocation4], 1
    %11 = vsyncpa %s10, 0
    %12 = vsyncpa [#allocation7], 0
    %13 = vsyncpa [#allocation10], 0
    %14 = vsyncpa [#allocation5], 0
    %s15 = scalar_lea.sflag [#allocation5], 1
    %16 = vsyncpa %s15, 0
    loop: start=0, step=1, limit=4
    $region2: #{tpu_custom_call.1} parent=1 // loop_pre_header
      _
    $region3: #{tpu_custom_call.1} parent=1 // loop_header
      %s18 = sphi 0, %s22
      %p19 = scmp.ge.s32.totalorder %s18, 4
      %s25 = sphi 0, %s44
      %s26 = sphi 0, %s40
      %s27 = sphi 0, %s36
      %s28 = sphi 0, %s25
      %s29 = sphi 0, %s26
      %s30 = sphi 0, %s27
      %s31 = sphi 0, %s28
      %s32 = sphi 0, %s29
      %s33 = sphi 0, %s30
      %s49 = sphi 0, %s51
      %s52 = sphi 0, %s49
      %s53 = sphi 0, %s52
      %s69 = sphi 0, %s53
      %s77 = sphi 0, %s79
      %s80 = sphi 0, %s77
      %s81 = sphi 0, %s80
      %s97 = sphi 0, %s81
      %s103 = sphi 0, %s105
      %s106 = sphi 0, %s103
      %s107 = sphi 0, %s106
      %s123 = sphi 0, %s107
      %s129 = sphi 0, %s131
      %s132 = sphi 0, %s129
      %s133 = sphi 0, %s132
      %s149 = sphi 0, %s133
      %s157 = sphi 0, %s159
      %s160 = sphi 0, %s157
      %s161 = sphi 0, %s160
      %s177 = sphi 0, %s161
    $region4: #{tpu_custom_call.1} parent=1 // loop_header_branch
      %21 = sbr.rel (%p19) target = $region8
    $region5: #{tpu_custom_call.1} parent=1 // loop_body
      %s23 = ssub.s32 %s18, 1
      %s24 = ssub.s32 %s18, 2
      %s34 = sadd.s32 1, %s27
      %p35 = scmp.ge.s32.totalorder %s34, 1
      %s36 = scalar_select %p35, 0, %s34
      %s37 = sadd.s32 1, %s26
      %s38 = scalar_select %p35, %s37, %s26
      %p39 = scmp.ge.s32.totalorder %s38, 1
      %s40 = scalar_select %p39, 0, %s38
      %s41 = sadd.s32 1, %s25
      %s42 = scalar_select %p39, %s41, %s25
      %p43 = scmp.ge.s32.totalorder %s42, 2
      %s44 = scalar_select %p43, 0, %s42
      %s45 = ssub.s32 %s25, %s44
      %s46 = ssub.s32 %s27, %s36
      %s47 = sor.u32 %s45, %s46
      %p48 = scmp.eq.s32.totalorder %s47, 0
      %s50 = sadd.s32 %s49, 1
      %s51 = scalar_select %p48, %s49, %s50
      %p54 = pneg %p48
      %p55 = scmp.eq.s32.totalorder %s18, 1
      %p56 = por %p54, %p55
      %p57 = scmp.ne.s32.totalorder %s49, %s52
      %p58 = scmp.eq.s32.totalorder %s18, 0
      %p59 = por %p57, %p58
      %p60 = scmp.ne.s32.totalorder %s49, %s52
      %p61 = scmp.eq.s32.totalorder %s23, 1
      %p62 = por %p60, %p61
      %p63 = scmp.ne.s32.totalorder %s52, %s53
      %p64 = scmp.eq.s32.totalorder %s23, 0
      %p65 = por %p63, %p64
      %p66 = scmp.ne.s32.totalorder %s52, %s53
      %p67 = scmp.eq.s32.totalorder %s24, 1
      %p68 = por %p66, %p67
      %p70 = scmp.ne.s32.totalorder %s53, %s69
      %p71 = scmp.eq.s32.totalorder %s24, 0
      %p72 = por %p70, %p71
      %s73 = ssub.s32 %s27, %s36
      %s74 = ssub.s32 %s26, %s40
      %s75 = sor.u32 %s73, %s74
      %p76 = scmp.eq.s32.totalorder %s75, 0
      %s78 = sadd.s32 %s77, 1
      %s79 = scalar_select %p76, %s77, %s78
      %p82 = pneg %p76
      %p83 = scmp.eq.s32.totalorder %s18, 1
      %p84 = por %p82, %p83
      %p85 = scmp.ne.s32.totalorder %s77, %s80
      %p86 = scmp.eq.s32.totalorder %s18, 0
      %p87 = por %p85, %p86
      %p88 = scmp.ne.s32.totalorder %s77, %s80
      %p89 = scmp.eq.s32.totalorder %s23, 1
      %p90 = por %p88, %p89
      %p91 = scmp.ne.s32.totalorder %s80, %s81
      %p92 = scmp.eq.s32.totalorder %s23, 0
      %p93 = por %p91, %p92
      %p94 = scmp.ne.s32.totalorder %s80, %s81
      %p95 = scmp.eq.s32.totalorder %s24, 1
      %p96 = por %p94, %p95
      %p98 = scmp.ne.s32.totalorder %s81, %s97
      %p99 = scmp.eq.s32.totalorder %s24, 0
      %p100 = por %p98, %p99
      %s101 = ssub.s32 %s26, %s40
      %p102 = scmp.eq.s32.totalorder %s101, 0
      %s104 = sadd.s32 %s103, 1
      %s105 = scalar_select %p102, %s103, %s104
      %p108 = pneg %p102
      %p109 = scmp.eq.s32.totalorder %s18, 1
      %p110 = por %p108, %p109
      %p111 = scmp.ne.s32.totalorder %s103, %s106
      %p112 = scmp.eq.s32.totalorder %s18, 0
      %p113 = por %p111, %p112
      %p114 = scmp.ne.s32.totalorder %s103, %s106
      %p115 = scmp.eq.s32.totalorder %s23, 1
      %p116 = por %p114, %p115
      %p117 = scmp.ne.s32.totalorder %s106, %s107
      %p118 = scmp.eq.s32.totalorder %s23, 0
      %p119 = por %p117, %p118
      %p120 = scmp.ne.s32.totalorder %s106, %s107
      %p121 = scmp.eq.s32.totalorder %s24, 1
      %p122 = por %p120, %p121
      %p124 = scmp.ne.s32.totalorder %s107, %s123
      %p125 = scmp.eq.s32.totalorder %s24, 0
      %p126 = por %p124, %p125
      %s127 = ssub.s32 %s26, %s40
      %p128 = scmp.eq.s32.totalorder %s127, 0
      %s130 = sadd.s32 %s129, 1
      %s131 = scalar_select %p128, %s129, %s130
      %p134 = pneg %p128
      %p135 = scmp.eq.s32.totalorder %s18, 1
      %p136 = por %p134, %p135
      %p137 = scmp.ne.s32.totalorder %s129, %s132
      %p138 = scmp.eq.s32.totalorder %s18, 0
      %p139 = por %p137, %p138
      %p140 = scmp.ne.s32.totalorder %s129, %s132
      %p141 = scmp.eq.s32.totalorder %s23, 1
      %p142 = por %p140, %p141
      %p143 = scmp.ne.s32.totalorder %s132, %s133
      %p144 = scmp.eq.s32.totalorder %s23, 0
      %p145 = por %p143, %p144
      %p146 = scmp.ne.s32.totalorder %s132, %s133
      %p147 = scmp.eq.s32.totalorder %s24, 1
      %p148 = por %p146, %p147
      %p150 = scmp.ne.s32.totalorder %s133, %s149
      %p151 = scmp.eq.s32.totalorder %s24, 0
      %p152 = por %p150, %p151
      %s153 = ssub.s32 %s25, %s44
      %s154 = ssub.s32 %s26, %s40
      %s155 = sor.u32 %s153, %s154
      %p156 = scmp.eq.s32.totalorder %s155, 0
      %s158 = sadd.s32 %s157, 1
      %s159 = scalar_select %p156, %s157, %s158
      %p162 = pneg %p156
      %p163 = scmp.eq.s32.totalorder %s18, 1
      %p164 = por %p162, %p163
      %p165 = scmp.ne.s32.totalorder %s157, %s160
      %p166 = scmp.eq.s32.totalorder %s18, 0
      %p167 = por %p165, %p166
      %p168 = scmp.ne.s32.totalorder %s157, %s160
      %p169 = scmp.eq.s32.totalorder %s23, 1
      %p170 = por %p168, %p169
      %p171 = scmp.ne.s32.totalorder %s160, %s161
      %p172 = scmp.eq.s32.totalorder %s23, 0
      %p173 = por %p171, %p172
      %p174 = scmp.ne.s32.totalorder %s160, %s161
      %p175 = scmp.eq.s32.totalorder %s24, 1
      %p176 = por %p174, %p175
      %p178 = scmp.ne.s32.totalorder %s161, %s177
      %p179 = scmp.eq.s32.totalorder %s24, 0
      %p180 = por %p178, %p179
      %p181 = scmp.le.s32.totalorder 1, %s18
      %p182 = scmp.lt.s32.totalorder %s18, 3
      %p183 = pnand %p181, %p182
      %p184 = pneg %p183
      // Predicated region
      $region9: #{tpu_custom_call.1} parent=5 // pred_check
        _
      $region10: #{tpu_custom_call.1} parent=5 // pred_check_branch
        %186 = sbr.rel (%p183) target = $region12
      $region11: #{tpu_custom_call.1} parent=5 // pred_region
        %s187 = ssub.s32 %s18, 1
        // Predicated region
        $region13: #{tpu_custom_call.1} parent=11 // pred_check
          %p188 = pneg %p93
        $region14: #{tpu_custom_call.1} parent=11 // pred_check_branch
          %190 = sbr.rel (%p188) target = $region16
        $region15: #{tpu_custom_call.1} parent=11 // pred_region
          %s191 = smul.u32 4, %s30
          %s193 = ssub.s32 256, 256
          %194 = vsyncadd [#allocation7], %s193
          %s195 = sadd.s32 %s29, %s191
          %s196 = smul.addr %s195, 64
          %s197 = scalar_lea.hbm %s1, %s196
          %s198 = sshll.u32 [#allocation6], 4
          %s199 = int_to_ptr.vmem [resolvable:$true] %s198
          %204 = dma.hbm_to_vmem [thread:$0]  %s197, 256, %s199, [#allocation7], 64, 64, 4
        $region16: #{tpu_custom_call.1} parent=11 // pred_fallthru
          _
        // Predicated region
        $region17: #{tpu_custom_call.1} parent=11 // pred_check
          %p205 = pneg %p119
        $region18: #{tpu_custom_call.1} parent=11 // pred_check_branch
          %207 = sbr.rel (%p205) target = $region20
        $region19: #{tpu_custom_call.1} parent=11 // pred_region
          %s209 = ssub.s32 256, 256
          %210 = vsyncadd [#allocation7], %s209
          %s211 = smul.addr %s29, 128
          %s212 = scalar_lea.hbm %s2, %s211
          %s213 = sshll.u32 [#allocation8], 4
          %s214 = int_to_ptr.vmem [resolvable:$true] %s213
          %219 = dma.hbm_to_vmem [thread:$0]  %s212, 256, %s214, [#allocation7], 128, 128, 8
        $region20: #{tpu_custom_call.1} parent=11 // pred_fallthru
          _
        // Predicated region
        $region21: #{tpu_custom_call.1} parent=11 // pred_check
          %p220 = pneg %p145
        $region22: #{tpu_custom_call.1} parent=11 // pred_check_branch
          %222 = sbr.rel (%p220) target = $region24
        $region23: #{tpu_custom_call.1} parent=11 // pred_region
          %s224 = ssub.s32 256, 256
          %225 = vsyncadd [#allocation10], %s224
          %s226 = smul.addr %s29, 128
          %s227 = scalar_lea.hbm %s3, %s226
          %s228 = sshll.u32 [#allocation9], 4
          %s229 = int_to_ptr.vmem [resolvable:$true] %s228
          %234 = dma.hbm_to_vmem [thread:$0]  %s227, 256, %s229, [#allocation10], 128, 128, 8
        $region24: #{tpu_custom_call.1} parent=11 // pred_fallthru
          _
      $region12: #{tpu_custom_call.1} parent=5 // pred_fallthru
        _
      %p235 = scmp.lt.s32.totalorder %s18, 2
      // Predicated region
      $region25: #{tpu_custom_call.1} parent=5 // pred_check
        %p236 = pneg %p235
      $region26: #{tpu_custom_call.1} parent=5 // pred_check_branch
        %238 = sbr.rel (%p236) target = $region28
      $region27: #{tpu_custom_call.1} parent=5 // pred_region
        // Predicated region
        $region29: #{tpu_custom_call.1} parent=27 // pred_check
          %p239 = pneg %p59
        $region30: #{tpu_custom_call.1} parent=27 // pred_check_branch
          %241 = sbr.rel (%p239) target = $region32
        $region31: #{tpu_custom_call.1} parent=27 // pred_region
          %s242 = sand.u32 %s49, 1
          %s243 = scalar_lea.sflag [#allocation4], %s242
          %s244 = sand.u32 %s49, 1
          %s245 = smul.addr %s244, 8
          %s246 = scalar_lea.vmem [#allocation3], %s245
          %s247 = smul.u32 2, %s25
          %s249 = ssub.s32 128, 128
          %250 = vsyncadd %s243, %s249
          %s251 = sadd.s32 %s27, %s247
          %s252 = smul.addr %s251, 64
          %s253 = scalar_lea.hbm %s0, %s252
          %s254 = sshll.u32 %s246, 4
          %s255 = int_to_ptr.vmem [resolvable:$true] %s254
          %260 = dma.hbm_to_vmem [thread:$0]  %s253, 128, %s255, %s243, 64, 64, 4
        $region32: #{tpu_custom_call.1} parent=27 // pred_fallthru
          _
      $region28: #{tpu_custom_call.1} parent=5 // pred_fallthru
        _
      %p261 = scmp.le.s32.totalorder 1, %s18
      %p262 = scmp.lt.s32.totalorder %s18, 3
      %p263 = pnand %p261, %p262
      %p264 = pneg %p263
      // Predicated region
      $region33: #{tpu_custom_call.1} parent=5 // pred_check
        _
      $region34: #{tpu_custom_call.1} parent=5 // pred_check_branch
        %266 = sbr.rel (%p263) target = $region36
      $region35: #{tpu_custom_call.1} parent=5 // pred_region
        %s267 = ssub.s32 %s18, 1
        %s268 = sand.u32 %s52, 1
        %s269 = scalar_lea.sflag [#allocation4], %s268
        %s270 = sand.u32 %s52, 1
        %s271 = smul.addr %s270, 8
        %s272 = scalar_lea.vmem [#allocation3], %s271
        // Predicated region
        $region37: #{tpu_custom_call.1} parent=35 // pred_check
          %p273 = pneg %p65
        $region38: #{tpu_custom_call.1} parent=35 // pred_check_branch
          %275 = sbr.rel (%p273) target = $region40
        $region39: #{tpu_custom_call.1} parent=35 // pred_region
          %276 = dma.done %s269, 128
        $region40: #{tpu_custom_call.1} parent=35 // pred_fallthru
          _
        // Predicated region
        $region41: #{tpu_custom_call.1} parent=35 // pred_check
          %p277 = pneg %p93
        $region42: #{tpu_custom_call.1} parent=35 // pred_check_branch
          %279 = sbr.rel (%p277) target = $region44
        $region43: #{tpu_custom_call.1} parent=35 // pred_region
          %280 = dma.done [#allocation7], 256
        $region44: #{tpu_custom_call.1} parent=35 // pred_fallthru
          _
        // Predicated region
        $region45: #{tpu_custom_call.1} parent=35 // pred_check
          %p281 = pneg %p119
        $region46: #{tpu_custom_call.1} parent=35 // pred_check_branch
          %283 = sbr.rel (%p281) target = $region48
        $region47: #{tpu_custom_call.1} parent=35 // pred_region
          %284 = dma.done [#allocation7], 256
        $region48: #{tpu_custom_call.1} parent=35 // pred_fallthru
          _
        // Predicated region
        $region49: #{tpu_custom_call.1} parent=35 // pred_check
          %p285 = pneg %p145
        $region50: #{tpu_custom_call.1} parent=35 // pred_check_branch
          %287 = sbr.rel (%p285) target = $region52
        $region51: #{tpu_custom_call.1} parent=35 // pred_region
          %288 = dma.done [#allocation10], 256
        $region52: #{tpu_custom_call.1} parent=35 // pred_fallthru
          _
        %s289 = sand.u32 %s52, 1
        %s290 = scalar_lea.sflag [#allocation4], %s289
        %s291 = sand.u32 %s52, 1
        %s292 = smul.addr %s291, 8
        %s293 = scalar_lea.vmem [#allocation3], %s292
        %p294 = pneg %p65
        %p295 = pneg %p62
        %p296 = pneg %p93
        %p297 = pneg %p90
        %p298 = pneg %p119
        %p299 = pneg %p116
        %p300 = pneg %p145
        %p301 = pneg %p142
        %p302 = pneg %p173
        %p303 = pneg %p170
        %s304 = sand.u32 %s160, 1
        %s305 = scalar_lea.sflag [#allocation5], %s304
        %s306 = sand.u32 %s160, 1
        %s307 = smul.addr %s306, 8
        %s308 = scalar_lea.vmem [#allocation11], %s307
        %s309 = smul.u32 2, %s28
        %s310 = smul.u32 4, %s30
        %s311 = smul.u32 2, %s28
        %p313 = scmp.eq.s32.totalorder %s30, 0
        // Predicated region
        $region53: #{tpu_custom_call.1} parent=35 // pred_check
          %p314 = pneg %p313
        $region54: #{tpu_custom_call.1} parent=35 // pred_check_branch
          %316 = sbr.rel (%p314) target = $region56
        $region55: #{tpu_custom_call.1} parent=35 // pred_region
          %vm317 = vcmask 523264
          %318 = vst.msk [vmem:[#allocation2] sm:$0xff] %vm317, 0.0
          %319 = vst.msk [vmem:[#allocation2 + $0x8] sm:$0xff] %vm317, 0.0
        $region56: #{tpu_custom_call.1} parent=35 // pred_fallthru
          _
        %v320 = vld [vmem:[#allocation2] sm:$0xff]
        %v321 = vld [vmem:[#allocation2 + $0x8] sm:$0xff]
        %v322 = vld [vmem:[%s272] sm:$0xf]
        %v323 = vld [vmem:[%s272 + $0x4] sm:$0xf]
        %v324 = vld [vmem:[#allocation6] sm:$0xf]
        %v325 = vld [vmem:[#allocation6 + $0x4] sm:$0xf]
        %v326 = vld [vmem:[#allocation6 + $0x8] sm:$0xf]
        %v327 = vld [vmem:[#allocation6 + $0xc] sm:$0xf]
        %v330 = vunpack.c.l.b16 %v322
        %v331 = vunpack.c.l.b16 %v323
        %v332 = vpack.c.b16 %v331, %v330
        %v337 = vunpack.c.l.b16 %v324
        %v338 = vunpack.c.l.b16 %v325
        %v339 = vunpack.c.l.b16 %v326
        %v340 = vunpack.c.l.b16 %v327
        %v341 = vpack.c.b16 %v338, %v337
        %v342 = vpack.c.b16 %v340, %v339
        %vm345 = vcmask 261120
        %v347 = vsel %vm345, %v332, 0
        %349 = vmatprep.subr.bf16.mxu0 0
        %350 = vmatpush1.bf16.msra.mxu0 0
        %351 = vmatprep.subr.bf16.mxu0 0
        %352 = vmatpush1.bf16.msra.mxu0 0
        %353 = vmatprep.subr.bf16.mxu0 0
        %354 = vmatpush1.bf16.msra.mxu0 0
        %355 = vmatprep.subr.bf16.mxu0 0
        %356 = vmatpush1.bf16.msra.mxu0 0
        %357 = vmatprep.subr.bf16.mxu0 0
        %358 = vmatpush1.bf16.msra.mxu0 0
        %359 = vmatprep.subr.bf16.mxu0 0
        %360 = vmatpush1.bf16.msra.mxu0 0
        %361 = vmatprep.subr.bf16.mxu0 0
        %362 = vmatpush1.bf16.msra.mxu0 %v342
        %363 = vmatprep.subr.bf16.mxu0 0
        %364 = vmatpush1.bf16.msra.mxu0 %v341
        %365 = vmatprep.subr.bf16.mxu0 0
        %366 = vmatpush2.bf16.msra.mxu0 0
        %367 = vmatprep.subr.bf16.mxu0 0
        %368 = vmatpush2.bf16.msra.mxu0 0
        %369 = vmatprep.subr.bf16.mxu0 0
        %370 = vmatpush2.bf16.msra.mxu0 0
        %371 = vmatprep.subr.bf16.mxu0 0
        %372 = vmatpush2.bf16.msra.mxu0 0
        %373 = vmatprep.subr.bf16.mxu0 0
        %374 = vmatpush2.bf16.msra.mxu0 0
        %375 = vmatprep.subr.bf16.mxu0 0
        %376 = vmatpush2.bf16.msra.mxu0 0
        %377 = vmatprep.subr.bf16.mxu0 0
        %378 = vmatpush2.bf16.msra.mxu0 0
        %379 = vmatprep.subr.bf16.mxu0 0
        %380 = vmatpush2.bf16.msra.mxu0 0
        %381 = vmatprep.mubr.bf16.mxu0 0
        %382 = vmatmul.mubr.bf16.gmra.mxu0 %v347
        %v383 = vpop.f32.mrf.mxu0
        %v384 = vadd.f32 0.0, %v383
        %v385 = vpop.f32.mrf.mxu0
        %v386 = vpop.f32.mrf.mxu0
        %v387 = vadd.f32 0.0, %v386
        %v388 = vpop.f32.mrf.mxu0
        %389 = vdwg.mxu0
        %v390 = vadd.f32 %v320, %v384
        %v391 = vadd.f32 %v321, %v387
        %vm392 = vcmask 523264
        %393 = vst.msk [vmem:[#allocation2] sm:$0xff] %vm392, %v390
        %394 = vst.msk [vmem:[#allocation2 + $0x8] sm:$0xff] %vm392, %v391
        // Predicated region
        $region57: #{tpu_custom_call.1} parent=35 // pred_check
          %p395 = pneg %p313
        $region58: #{tpu_custom_call.1} parent=35 // pred_check_branch
          %397 = sbr.rel (%p395) target = $region60
        $region59: #{tpu_custom_call.1} parent=35 // pred_region
          %v398 = vld [vmem:[#allocation2] sm:$0xff]
          %v399 = vld [vmem:[#allocation2 + $0x8] sm:$0xff]
          %v400 = vlaneseq
          %v401 = vshrl.u32 %v400, 7
          %v402 = vadd.s32 %v401, 8
          %v403 = vadd.s32 %v401, 16
          %v404 = vadd.s32 %v401, 24
          %v405 = vadd.s32 %v401, 32
          %v406 = vadd.s32 %v401, 40
          %v407 = vadd.s32 %v401, 48
          %v408 = vadd.s32 %v401, 56
          %v409 = vlaneseq
          %v410 = vand.u32 %v409, 127
          %v411 = vadd.s32 %v401, 1
          %v412 = vadd.s32 %v402, 1
          %v413 = vadd.s32 %v403, 1
          %v414 = vadd.s32 %v404, 1
          %v415 = vadd.s32 %v405, 1
          %v416 = vadd.s32 %v406, 1
          %v417 = vadd.s32 %v407, 1
          %v418 = vadd.s32 %v408, 1
          %vm419 = vcmp.lt.s32.totalorder %v401, 0
          %v420 = vsub.s32 0, %v401
          %v421 = vsel %vm419, %v420, %v401
          %v422 = vshrl.u32 %v421, 1
          %v423 = vand.u32 %v421, 1
          %v424 = vsub.s32 0, %v423
          %v425 = vsel %vm419, %v424, %v423
          %vm426 = vcmp.lt.s32.totalorder %v402, 0
          %v427 = vsub.s32 0, %v402
          %v428 = vsel %vm426, %v427, %v402
          %v429 = vshrl.u32 %v428, 1
          %v430 = vand.u32 %v428, 1
          %v431 = vsub.s32 0, %v430
          %v432 = vsel %vm426, %v431, %v430
          %vm433 = vcmp.lt.s32.totalorder %v403, 0
          %v434 = vsub.s32 0, %v403
          %v435 = vsel %vm433, %v434, %v403
          %v436 = vshrl.u32 %v435, 1
          %v437 = vand.u32 %v435, 1
          %v438 = vsub.s32 0, %v437
          %v439 = vsel %vm433, %v438, %v437
          %vm440 = vcmp.lt.s32.totalorder %v404, 0
          %v441 = vsub.s32 0, %v404
          %v442 = vsel %vm440, %v441, %v404
          %v443 = vshrl.u32 %v442, 1
          %v444 = vand.u32 %v442, 1
          %v445 = vsub.s32 0, %v444
          %v446 = vsel %vm440, %v445, %v444
          %vm447 = vcmp.lt.s32.totalorder %v405, 0
          %v448 = vsub.s32 0, %v405
          %v449 = vsel %vm447, %v448, %v405
          %v450 = vshrl.u32 %v449, 1
          %v451 = vand.u32 %v449, 1
          %v452 = vsub.s32 0, %v451
          %v453 = vsel %vm447, %v452, %v451
          %vm454 = vcmp.lt.s32.totalorder %v406, 0
          %v455 = vsub.s32 0, %v406
          %v456 = vsel %vm454, %v455, %v406
          %v457 = vshrl.u32 %v456, 1
          %v458 = vand.u32 %v456, 1
          %v459 = vsub.s32 0, %v458
          %v460 = vsel %vm454, %v459, %v458
          %vm461 = vcmp.lt.s32.totalorder %v407, 0
          %v462 = vsub.s32 0, %v407
          %v463 = vsel %vm461, %v462, %v407
          %v464 = vshrl.u32 %v463, 1
          %v465 = vand.u32 %v463, 1
          %v466 = vsub.s32 0, %v465
          %v467 = vsel %vm461, %v466, %v465
          %vm468 = vcmp.lt.s32.totalorder %v408, 0
          %v469 = vsub.s32 0, %v408
          %v470 = vsel %vm468, %v469, %v408
          %v471 = vshrl.u32 %v470, 1
          %v472 = vand.u32 %v470, 1
          %v473 = vsub.s32 0, %v472
          %v474 = vsel %vm468, %v473, %v472
          %vm475 = vcmp.ne.s32.totalorder %v425, 0
          %vm476 = vcmp.ne.s32.totalorder %v432, 0
          %vm477 = vcmp.ne.s32.totalorder %v439, 0
          %vm478 = vcmp.ne.s32.totalorder %v446, 0
          %vm479 = vcmp.ne.s32.totalorder %v453, 0
          %vm480 = vcmp.ne.s32.totalorder %v460, 0
          %vm481 = vcmp.ne.s32.totalorder %v467, 0
          %vm482 = vcmp.ne.s32.totalorder %v474, 0
          %vm483 = vcmp.lt.s32.totalorder %v425, 0
          %vm484 = vcmp.lt.s32.totalorder %v432, 0
          %vm485 = vcmp.lt.s32.totalorder %v439, 0
          %vm486 = vcmp.lt.s32.totalorder %v446, 0
          %vm487 = vcmp.lt.s32.totalorder %v453, 0
          %vm488 = vcmp.lt.s32.totalorder %v460, 0
          %vm489 = vcmp.lt.s32.totalorder %v467, 0
          %vm490 = vcmp.lt.s32.totalorder %v474, 0
          %vm491 = vmand %vm483, %vm475
          %vm492 = vmand %vm484, %vm476
          %vm493 = vmand %vm485, %vm477
          %vm494 = vmand %vm486, %vm478
          %vm495 = vmand %vm487, %vm479
          %vm496 = vmand %vm488, %vm480
          %vm497 = vmand %vm489, %vm481
          %vm498 = vmand %vm490, %vm482
          %v499 = vadd.s32 %v425, 2
          %v500 = vadd.s32 %v432, 2
          %v501 = vadd.s32 %v439, 2
          %v502 = vadd.s32 %v446, 2
          %v503 = vadd.s32 %v453, 2
          %v504 = vadd.s32 %v460, 2
          %v505 = vadd.s32 %v467, 2
          %v506 = vadd.s32 %v474, 2
          %v507 = vsel %vm491, %v499, %v425
          %v508 = vsel %vm492, %v500, %v432
          %v509 = vsel %vm493, %v501, %v439
          %v510 = vsel %vm494, %v502, %v446
          %v511 = vsel %vm495, %v503, %v453
          %v512 = vsel %vm496, %v504, %v460
          %v513 = vsel %vm497, %v505, %v467
          %v514 = vsel %vm498, %v506, %v474
          %v515 = vmul.u32 %v507, 2
          %v516 = vmul.u32 %v508, 2
          %v517 = vmul.u32 %v509, 2
          %v518 = vmul.u32 %v510, 2
          %v519 = vmul.u32 %v511, 2
          %v520 = vmul.u32 %v512, 2
          %v521 = vmul.u32 %v513, 2
          %v522 = vmul.u32 %v514, 2
          %v523 = vsub.s32 %v411, %v515
          %v524 = vsub.s32 %v412, %v516
          %v525 = vsub.s32 %v413, %v517
          %v526 = vsub.s32 %v414, %v518
          %v527 = vsub.s32 %v415, %v519
          %v528 = vsub.s32 %v416, %v520
          %v529 = vsub.s32 %v417, %v521
          %v530 = vsub.s32 %v418, %v522
          %vm531 = vcmp.eq.s32.totalorder %v410, %v523
          %vm532 = vcmp.eq.s32.totalorder %v410, %v524
          %vm533 = vcmp.eq.s32.totalorder %v410, %v525
          %vm534 = vcmp.eq.s32.totalorder %v410, %v526
          %vm535 = vcmp.eq.s32.totalorder %v410, %v527
          %vm536 = vcmp.eq.s32.totalorder %v410, %v528
          %vm537 = vcmp.eq.s32.totalorder %v410, %v529
          %vm538 = vcmp.eq.s32.totalorder %v410, %v530
          %v539 = vsel %vm531, 1, 0
          %v540 = vsel %vm532, 1, 0
          %v541 = vsel %vm533, 1, 0
          %v542 = vsel %vm534, 1, 0
          %v543 = vsel %vm535, 1, 0
          %v544 = vsel %vm536, 1, 0
          %v545 = vsel %vm537, 1, 0
          %v546 = vsel %vm538, 1, 0
          %v547 = vcvt.s32.f32 %v539
          %v548 = vcvt.s32.f32 %v540
          %v549 = vcvt.s32.f32 %v541
          %v550 = vcvt.s32.f32 %v542
          %v551 = vcvt.s32.f32 %v543
          %v552 = vcvt.s32.f32 %v544
          %v553 = vcvt.s32.f32 %v545
          %v554 = vcvt.s32.f32 %v546
          %v556 = vsel %vm392, %v398, 0
          %v559 = vsel %vm392, %v399, 0
          %561 = vmatprep.subr.mxu0 0.0
          %562 = vmatpush1.msra.mxu0 0.0
          %563 = vmatprep.subr.mxu0 0.0
          %564 = vmatpush1.msra.mxu0 0.0
          %565 = vmatprep.subr.mxu0 0.0
          %566 = vmatpush1.msra.mxu0 0.0
          %567 = vmatprep.subr.mxu0 0.0
          %568 = vmatpush1.msra.mxu0 0.0
          %569 = vmatprep.subr.mxu0 0.0
          %570 = vmatpush1.msra.mxu0 0.0
          %571 = vmatprep.subr.mxu0 0.0
          %572 = vmatpush1.msra.mxu0 0.0
          %573 = vmatprep.subr.mxu0 0.0
          %574 = vmatpush1.msra.mxu0 0.0
          %575 = vmatprep.subr.mxu0 0.0
          %576 = vmatpush1.msra.mxu0 0.0
          %577 = vmatprep.subr.mxu0 0.0
          %578 = vmatpush1.msra.mxu0 %v554
          %579 = vmatprep.subr.mxu0 0.0
          %580 = vmatpush1.msra.mxu0 %v553
          %581 = vmatprep.subr.mxu0 0.0
          %582 = vmatpush1.msra.mxu0 %v552
          %583 = vmatprep.subr.mxu0 0.0
          %584 = vmatpush1.msra.mxu0 %v551
          %585 = vmatprep.subr.mxu0 0.0
          %586 = vmatpush1.msra.mxu0 %v550
          %587 = vmatprep.subr.mxu0 0.0
          %588 = vmatpush1.msra.mxu0 %v549
          %589 = vmatprep.subr.mxu0 0.0
          %590 = vmatpush1.msra.mxu0 %v548
          %591 = vmatprep.subr.mxu0 0.0
          %592 = vmatpush1.msra.mxu0 %v547
          %593 = vmatprep.subr.mxu0 0.0
          %594 = vmatpush2.msra.mxu0 0.0
          %595 = vmatprep.subr.mxu0 0.0
          %596 = vmatpush2.msra.mxu0 0.0
          %597 = vmatprep.subr.mxu0 0.0
          %598 = vmatpush2.msra.mxu0 0.0
          %599 = vmatprep.subr.mxu0 0.0
          %600 = vmatpush2.msra.mxu0 0.0
          %601 = vmatprep.subr.mxu0 0.0
          %602 = vmatpush2.msra.mxu0 0.0
          %603 = vmatprep.subr.mxu0 0.0
          %604 = vmatpush2.msra.mxu0 0.0
          %605 = vmatprep.subr.mxu0 0.0
          %606 = vmatpush2.msra.mxu0 0.0
          %607 = vmatprep.subr.mxu0 0.0
          %608 = vmatpush2.msra.mxu0 0.0
          %609 = vmatprep.subr.mxu0 0.0
          %610 = vmatpush2.msra.mxu0 0.0
          %611 = vmatprep.subr.mxu0 0.0
          %612 = vmatpush2.msra.mxu0 0.0
          %613 = vmatprep.subr.mxu0 0.0
          %614 = vmatpush2.msra.mxu0 0.0
          %615 = vmatprep.subr.mxu0 0.0
          %616 = vmatpush2.msra.mxu0 0.0
          %617 = vmatprep.subr.mxu0 0.0
          %618 = vmatpush2.msra.mxu0 0.0
          %619 = vmatprep.subr.mxu0 0.0
          %620 = vmatpush2.msra.mxu0 0.0
          %621 = vmatprep.subr.mxu0 0.0
          %622 = vmatpush2.msra.mxu0 0.0
          %623 = vmatprep.subr.mxu0 0.0
          %624 = vmatpush2.msra.mxu0 0.0
          %625 = vmatprep.mubr.f32.mxu0 0.0
          %626 = vmatmul.mubr.f32.gmra.mxu0 %v556
          %v627 = vpop.f32.mrf.mxu0
          %v628 = vadd.f32 0.0, %v627
          %v629 = vpop.f32.mrf.mxu0
          %630 = vmatprep.mubr.f32.mxu0 0.0
          %631 = vmatmul.mubr.f32.gmra.mxu0 %v559
          %v632 = vpop.f32.mrf.mxu0
          %v633 = vadd.f32 0.0, %v632
          %v634 = vpop.f32.mrf.mxu0
          %635 = vdwg.mxu0
          %v636 = vld [vmem:[#allocation8] sm:$0xff]
          %v637 = vld [vmem:[#allocation8 + $0x8] sm:$0xff]
          %v638 = vmul.f32 %v398, %v636
          %v639 = vmul.f32 %v399, %v637
          %v640 = vld [vmem:[#allocation9] sm:$0xff]
          %v641 = vld [vmem:[#allocation9 + $0x8] sm:$0xff]
          %v642 = vmul.f32 %v628, %v640
          %v643 = vmul.f32 %v633, %v641
          %v644 = vadd.f32 %v638, %v642
          %v645 = vadd.f32 %v639, %v643
          %v646 = vpack.c.bf16 %v645, %v644
          %v648 = vunpack.c.l.b16 %v646
          %v649 = vunpack.c.h.b16 %v646
          %v650 = vpack.c.b16 %v648, %v648
          %v651 = vpack.c.b16 %v649, %v649
          %vm654 = vcmask 519168
          %655 = vst.msk [vmem:[%s308] sm:$0xf] %vm654, %v650
          %656 = vst.msk [vmem:[%s308 + $0x4] sm:$0xf] %vm654, %v651
        $region60: #{tpu_custom_call.1} parent=35 // pred_fallthru
          _
        %s657 = sand.u32 %s160, 1
        %s658 = scalar_lea.sflag [#allocation5], %s657
        %s659 = sand.u32 %s160, 1
        %s660 = smul.addr %s659, 8
        %s661 = scalar_lea.vmem [#allocation11], %s660
        // Predicated region
        $region61: #{tpu_custom_call.1} parent=35 // pred_check
          %p662 = pneg %p170
        $region62: #{tpu_custom_call.1} parent=35 // pred_check_branch
          %664 = sbr.rel (%p662) target = $region64
        $region63: #{tpu_custom_call.1} parent=35 // pred_region
          %s665 = smul.u32 2, %s28
          %s667 = ssub.s32 128, 128
          %668 = vsyncadd %s658, %s667
          %s669 = sadd.s32 %s29, %s665
          %s670 = smul.addr %s669, 64
          %s671 = scalar_lea.hbm %s4, %s670
          %s672 = sshll.u32 %s661, 4
          %s673 = int_to_ptr.vmem [resolvable:$true] %s672
          %678 = dma.vmem_to_hbm [thread:$0]  %s673, 128, %s671, %s658, 64, 64, 4
        $region64: #{tpu_custom_call.1} parent=35 // pred_fallthru
          _
      $region36: #{tpu_custom_call.1} parent=5 // pred_fallthru
        _
      %p679 = scmp.le.s32.totalorder 2, %s18
      // Predicated region
      $region65: #{tpu_custom_call.1} parent=5 // pred_check
        %p680 = pneg %p679
      $region66: #{tpu_custom_call.1} parent=5 // pred_check_branch
        %682 = sbr.rel (%p680) target = $region68
      $region67: #{tpu_custom_call.1} parent=5 // pred_region
        %s683 = ssub.s32 %s18, 2
        // Predicated region
        $region69: #{tpu_custom_call.1} parent=67 // pred_check
          %p684 = pneg %p176
        $region70: #{tpu_custom_call.1} parent=67 // pred_check_branch
          %686 = sbr.rel (%p684) target = $region72
        $region71: #{tpu_custom_call.1} parent=67 // pred_region
          %s687 = sand.u32 %s161, 1
          %s688 = scalar_lea.sflag [#allocation5], %s687
          %s689 = sand.u32 %s161, 1
          %s690 = smul.addr %s689, 8
          %s691 = scalar_lea.vmem [#allocation11], %s690
          %692 = dma.done %s688, 128
        $region72: #{tpu_custom_call.1} parent=67 // pred_fallthru
          _
      $region68: #{tpu_custom_call.1} parent=5 // pred_fallthru
        _
    $region6: #{tpu_custom_call.1} parent=1 // loop_footer
      %s22 = sadd.s32 1, %s18
    $region7: #{tpu_custom_call.1} parent=1 // loop_footer_branch
      %17 = sbr.rel target = $region3
    $region8: #{tpu_custom_call.1} parent=1 // loop_exit
      _
    %693 = vsyncpa [#allocation4], 1
    %s694 = scalar_lea.sflag [#allocation4], 1
    %695 = vsyncpa %s694, 1
    %696 = vsyncpa [#allocation7], 1
    %697 = vsyncpa [#allocation10], 1
    %698 = vsyncpa [#allocation5], 1
    %s699 = scalar_lea.sflag [#allocation5], 1
    %700 = vsyncpa %s699, 1

</llo_original>
